<compile_context>
chip_gen: v5e
topology: v5e:2x2
jax: 0.10.0
libtpu: 0.0.40
codegen_flags: <defaults>
</compile_context>

<pallas_src>
import math

import jax
import jax.numpy as jnp
from jax.experimental import pallas as pl
from jax.experimental.pallas import tpu as pltpu


def _drop_path_kernel(mask_ref, x_ref, o_ref):
    """mask_ref: (TB, 1) in x.dtype, x_ref/o_ref: (TB, TF).  Broadcast multiply."""
    o_ref[...] = x_ref[...] * mask_ref[...]


def _round_up(v: int, m: int) -> int:
    return ((v + m - 1) // m) * m


def drop_path_pallas(x: jax.Array,
                     drop_prob: float = 0.0,
                     training: bool = False,
                     scale_by_keep: bool = True,
                     *,
                     key: jax.Array | None = None,
                     donate_x: bool = False) -> jax.Array:
    """JAX/Pallas equivalent of torch `drop_path` on an NCHW (or any-rank) input."""
    if drop_prob == 0.0 or not training:
        return x
    if key is None:
        raise ValueError(
            "drop_path_pallas: an explicit PRNG key is required in training mode "
            "(a fixed default key would repeat the same drop pattern every call).")

    keep_prob = 1.0 - drop_prob
    B = x.shape[0]
    F = int(math.prod(x.shape[1:]))
    itemsize = jnp.dtype(x.dtype).itemsize

    # One Bernoulli(keep_prob) draw per sample, pre-scaled, pre-cast to x.dtype
    # (matches torch: the divide happens in x.dtype).
    keep = jax.random.bernoulli(key, p=keep_prob, shape=(B, 1))
    mask = keep.astype(jnp.float32)
    if keep_prob > 0.0 and scale_by_keep:
        mask = mask * (1.0 / keep_prob)
    mask = mask.astype(x.dtype)

    x2d = x.reshape(B, F)

    # --- Tile selection -----------------------------------------------------
    # Dtype-aware sublane multiple: 8 for f32, 16 for bf16, 32 for int8/fp8.
    sub = max(8, 32 // itemsize)
    TB = min(_round_up(B, sub), 256)
    # Lane-dense TF (multiple of 128), sized so one tile is ~2 MiB.  With
    # 2x input + 2x output pipelined buffers that is ~8 MiB of VMEM: fits the
    # 16/32 MiB scoped defaults and v7x's 64 MiB physical with big margin.
    target_tile_bytes = 2 * 1024 * 1024
    tf_cap = max(128, (target_tile_bytes // (TB * itemsize)) // 128 * 128)
    TF = min(_round_up(F, 128), tf_cap)

    # Partial last blocks (B % TB != 0 or F % TF != 0) are masked by Pallas;
    # the multiply is elementwise so padded garbage is never written back.
    grid = (pl.cdiv(B, TB), pl.cdiv(F, TF))

    cost = pl.CostEstimate(
        flops=B * F,
        transcendentals=0,
        bytes_accessed=2 * B * F * itemsize + B * itemsize,
    )

    out2d = pl.pallas_call(
        _drop_path_kernel,
        out_shape=jax.ShapeDtypeStruct((B, F), x.dtype),
        grid=grid,
        in_specs=[
            # Mask block index is constant along the inner (F) grid axis, so
            # the tiny (TB, 1) DMA is not reissued every step.
            pl.BlockSpec((TB, 1), lambda i, j: (i, 0)),
            pl.BlockSpec((TB, TF), lambda i, j: (i, j)),
        ],
        out_specs=pl.BlockSpec((TB, TF), lambda i, j: (i, j)),
        compiler_params=pltpu.CompilerParams(
            dimension_semantics=("parallel", "parallel"),
            vmem_limit_bytes=32 * 1024 * 1024),
        cost_estimate=cost,
        # In-place write when the caller donates x (x2d is input index 1).
        input_output_aliases=({1: 0} if donate_x else {}),
    )(mask, x2d)

    return out2d.reshape(x.shape)


class DropPath:
    """Drop paths (Stochastic Depth) per sample — Pallas-backed."""

    def __init__(self, drop_prob: float = 0.0, scale_by_keep: bool = True):
        self.drop_prob = drop_prob
        self.scale_by_keep = scale_by_keep
        self.training = True   # mirror torch nn.Module default

    def __call__(self, x, key: jax.Array | None = None, donate_x: bool = False):
        return drop_path_pallas(x, self.drop_prob, self.training,
                                self.scale_by_keep, key=key, donate_x=donate_x)


if __name__ == "__main__":
    root_key = jax.random.PRNGKey(0)
    x_key, mask_key, x2_key, mask2_key = jax.random.split(root_key, 4)

    # ---- Case 1: NCHW input, B=2, C=4, H=W=16 -> flattened F = 1024 --------
    x = jax.random.normal(x_key, (2, 4, 16, 16), dtype=jnp.float32)

    module = DropPath(drop_prob=0.25, scale_by_keep=True)
    module.training = True

    out = jax.block_until_ready(module(x, key=mask_key))

    # Exact reference: same key -> same per-sample Bernoulli draws.
    keep_prob = 1.0 - module.drop_prob
    keep_ref = jax.random.bernoulli(mask_key, p=keep_prob, shape=(x.shape[0], 1))
    mask_ref = keep_ref.astype(jnp.float32) * (1.0 / keep_prob)
    expected = x * mask_ref.reshape(-1, 1, 1, 1)
    assert bool(jnp.max(jnp.abs(out - expected)) < 1e-5), "mismatch vs reference"

    # Every sample is either zeroed or exactly x / keep_prob.
    x_np, out_np = jax.device_get(x), jax.device_get(out)
    for b in range(x_np.shape[0]):
        zeroed = float(abs(out_np[b]).max()) == 0.0
        scaled = float(abs(out_np[b] - x_np[b] / keep_prob).max()) < 1e-5
        assert zeroed or scaled, f"sample {b}: not a valid drop-path output"

    # In-place variant (donated buffer); expected derived from the original x.
    x_donatable = x + 0.0
    out_inplace = jax.block_until_ready(
        module(x_donatable, key=mask_key, donate_x=True))
    assert bool(jnp.max(jnp.abs(out_inplace - expected)) < 1e-5), "donate mismatch"

    # ---- Case 2: non-divisible shape exercises the cdiv / partial-block path
    x_odd = jax.random.normal(x2_key, (3, 5, 7, 9), dtype=jnp.float32)  # F = 315
    out_odd = jax.block_until_ready(module(x_odd, key=mask2_key))
    keep_odd = jax.random.bernoulli(mask2_key, p=keep_prob, shape=(x_odd.shape[0], 1))
    exp_odd = x_odd * (keep_odd.astype(jnp.float32) * (1.0 / keep_prob)).reshape(-1, 1, 1, 1)
    assert bool(jnp.max(jnp.abs(out_odd - exp_odd)) < 1e-5), "odd-shape mismatch"

    # ---- Eval / drop_prob=0 path is the identity ----------------------------
    module.training = False
    out_eval = jax.block_until_ready(module(x))
    assert bool(jnp.all(out_eval == x))

    print("KERNEL_OK")
</pallas_src>

<mosaic_0001>
module attributes {stable_mosaic.version = 11 : i64} {
  func.func @_drop_path_kernel(%arg0: i32, %arg1: i32, %arg2: memref<8x1xf32, #tpu.memory_space<vmem>>, %arg3: memref<8x1024xf32, #tpu.memory_space<vmem>>, %arg4: memref<8x1024xf32, #tpu.memory_space<vmem>>) attributes {dimension_semantics = [#tpu.dimension_semantics<parallel>, #tpu.dimension_semantics<parallel>], iteration_bounds = array<i64: 1, 1>, scalar_prefetch = 0 : i64, scratch_operands = 0 : i64, tpu.core_type = #tpu.core_type<tc>, window_params = [{transform_indices = @transform_0, window_bounds = array<i64: 8, 1>}, {transform_indices = @transform_1, window_bounds = array<i64: 8, 1024>}, {transform_indices = @transform_2, window_bounds = array<i64: 8, 1024>}]} {
    %c0 = arith.constant 0 : index
    %c0_0 = arith.constant 0 : index
    %0 = vector.load %arg3[%c0, %c0_0] : memref<8x1024xf32, #tpu.memory_space<vmem>>, vector<8x1024xf32>
    %c0_1 = arith.constant 0 : index
    %c0_2 = arith.constant 0 : index
    %1 = vector.load %arg2[%c0_1, %c0_2] : memref<8x1xf32, #tpu.memory_space<vmem>>, vector<8x1xf32>
    %2 = vector.broadcast %1 : vector<8x1xf32> to vector<8x1024xf32>
    %3 = arith.mulf %0, %2 : vector<8x1024xf32>
    %c0_3 = arith.constant 0 : index
    %c0_4 = arith.constant 0 : index
    %4 = vector.load %arg4[%c0_3, %c0_4] : memref<8x1024xf32, #tpu.memory_space<vmem>>, vector<8x1024xf32>
    tpu.vector_store %arg4[%c0_3, %c0_4], %3 {strides = array<i32>} : memref<8x1024xf32, #tpu.memory_space<vmem>>, vector<8x1024xf32>,
    return
  }
  func.func @transform_0(%arg0: i32, %arg1: i32) -> (i32, i32) {
    %c0_i32 = arith.constant 0 : i32
    %c0_i32_0 = arith.constant 0 : i32
    return %arg0, %c0_i32 : i32, i32
  }
  func.func @transform_1(%arg0: i32, %arg1: i32) -> (i32, i32) {
    %c0_i32 = arith.constant 0 : i32
    return %arg0, %arg1 : i32, i32
  }
  func.func @transform_2(%arg0: i32, %arg1: i32) -> (i32, i32) {
    %c0_i32 = arith.constant 0 : i32
    return %arg0, %arg1 : i32, i32
  }
}

</mosaic_0001>

<llo_original>
// kernel: tpu_custom_call.1
$region0: #{tpu_custom_call.1}
  #allocation0 [shape = 'u32[]', space=smem, size = 0x4, offset = 0x4, fixed_abs, tag = 'smem constant byte address 0x4 - core index']
  #allocation1 [shape = 'u32[72,128]{1,0:T(1,128)}', space=vmem, size = 0x9000, scoped, tag = 'internal scratch']
  %s0 = inlined_call_operand.vmem [shape: f32[2,1], index: 0, kind: input, shape index: {}]
  %s1 = inlined_call_operand.hbm [shape: f32[2,1024], index: 1, kind: input, shape index: {}]
  %s2 = inlined_call_operand.hbm [shape: f32[2,1024], index: 2, kind: output, shape index: {}]
  %s3 = sld [smem:[#allocation0]]
  $region22: #{tpu_custom_call.1} parent=0
    _
  %s5 = ssub.s32 1, %s3
  %s6 = scalar_select 0, %s5, %s3
  $region1: #{tpu_custom_call.1} parent=0
    #allocation2 [shape = 'u8[32768]{0}', space=vmem, size = 0x8000, scoped, tag = 'input window, operand 1, single buffered']
    #allocation3 [shape = 's32[1]{0}', space=sflag, size = 0x4, scoped, tag = 'scoped memory for tpu_custom_call.1']
    #allocation4 [shape = 's32[1]{0}', space=sflag, size = 0x4, scoped, tag = 'scoped memory for tpu_custom_call.1']
    #allocation5 [shape = 'u8[32768]{0}', space=vmem, size = 0x8000, scoped, tag = 'output window, operand 0, single buffered']
    %7 = vsyncpa [#allocation3], 0
    %8 = vsyncpa [#allocation4], 0
    // Predicated region
    $region2: #{tpu_custom_call.1} parent=1 // pred_check
      _
    $region3: #{tpu_custom_call.1} parent=1 // pred_check_branch
      %10 = sbr.rel (0) target = $region5
    $region4: #{tpu_custom_call.1} parent=1 // pred_region
      _
    $region5: #{tpu_custom_call.1} parent=1 // pred_fallthru
      _
    // Predicated region
    $region6: #{tpu_custom_call.1} parent=1 // pred_check
      _
    $region7: #{tpu_custom_call.1} parent=1 // pred_check_branch
      %12 = sbr.rel (0) target = $region9
    $region8: #{tpu_custom_call.1} parent=1 // pred_region
      %14 = vsyncadd [#allocation3], 768
      %s15 = sshll.u32 %s1, 4
      %s16 = int_to_ptr.hbm [resolvable:$true] %s15
      %s17 = sshll.u32 [#allocation2], 4
      %s18 = int_to_ptr.vmem [resolvable:$true] %s17
      %23 = dma.hbm_to_vmem [thread:$0]  %s16, 256, %s18, [#allocation3], 256, 256, 16
    $region9: #{tpu_custom_call.1} parent=1 // pred_fallthru
      _
    // Predicated region
    $region10: #{tpu_custom_call.1} parent=1 // pred_check
      _
    $region11: #{tpu_custom_call.1} parent=1 // pred_check_branch
      %25 = sbr.rel (0) target = $region13
    $region12: #{tpu_custom_call.1} parent=1 // pred_region
      %27 = dma.done [#allocation3], 1024
    $region13: #{tpu_custom_call.1} parent=1 // pred_fallthru
      _
    %v28 = vld [vmem:[#allocation2] sm:$0xff]
    %v29 = vld [vmem:[#allocation2 + $0x8] sm:$0xff]
    %v30 = vld [vmem:[#allocation2 + $0x10] sm:$0xff]
    %v31 = vld [vmem:[#allocation2 + $0x18] sm:$0xff]
    %v32 = vld [vmem:[#allocation2 + $0x20] sm:$0xff]
    %v33 = vld [vmem:[#allocation2 + $0x28] sm:$0xff]
    %v34 = vld [vmem:[#allocation2 + $0x30] sm:$0xff]
    %v35 = vld [vmem:[#allocation2 + $0x38] sm:$0xff]
    %v36 = vld [vmem:[%s0] sm:$0xff]
    %38 = vset.pattern.permute.xlu0 0
    %39 = vperm.xlu0 %38, %v36
    %v40 = vpop.permute.xlu0 %39
    %v42 = vunpack.c.l.s4 269488144
    %v43 = vunpack.c.0.s8 %v42
    %v44 = vperm.slane %v40, %v43
    %v46 = vunpack.c.l.s4 842150450
    %v47 = vunpack.c.0.s8 %v46
    %v48 = vperm.slane %v40, %v47
    %v50 = vunpack.c.l.s4 1414812756
    %v51 = vunpack.c.0.s8 %v50
    %v52 = vperm.slane %v40, %v51
    %v54 = vunpack.c.l.s4 1987475062
    %v55 = vunpack.c.0.s8 %v54
    %v56 = vperm.slane %v40, %v55
    %v61 = vmul.f32 %v28, %v44
    %v62 = vmul.f32 %v29, %v44
    %v63 = vmul.f32 %v30, %v48
    %v64 = vmul.f32 %v31, %v48
    %v65 = vmul.f32 %v32, %v52
    %v66 = vmul.f32 %v33, %v52
    %v67 = vmul.f32 %v34, %v56
    %v68 = vmul.f32 %v35, %v56
    %69 = vst [vmem:[#allocation5] sm:$0xff] %v61
    %70 = vst [vmem:[#allocation5 + $0x8] sm:$0xff] %v62
    %71 = vst [vmem:[#allocation5 + $0x10] sm:$0xff] %v63
    %72 = vst [vmem:[#allocation5 + $0x18] sm:$0xff] %v64
    %73 = vst [vmem:[#allocation5 + $0x20] sm:$0xff] %v65
    %74 = vst [vmem:[#allocation5 + $0x28] sm:$0xff] %v66
    %75 = vst [vmem:[#allocation5 + $0x30] sm:$0xff] %v67
    %76 = vst [vmem:[#allocation5 + $0x38] sm:$0xff] %v68
    // Predicated region
    $region14: #{tpu_custom_call.1} parent=1 // pred_check
      _
    $region15: #{tpu_custom_call.1} parent=1 // pred_check_branch
      %78 = sbr.rel (0) target = $region17
    $region16: #{tpu_custom_call.1} parent=1 // pred_region
      %80 = vsyncadd [#allocation4], 768
      %s81 = sshll.u32 [#allocation5], 4
      %s82 = int_to_ptr.vmem [resolvable:$true] %s81
      %s83 = sshll.u32 %s2, 4
      %s84 = int_to_ptr.hbm [resolvable:$true] %s83
      %89 = dma.vmem_to_hbm [thread:$0]  %s82, 256, %s84, [#allocation4], 256, 256, 16
    $region17: #{tpu_custom_call.1} parent=1 // pred_fallthru
      _
    // Predicated region
    $region18: #{tpu_custom_call.1} parent=1 // pred_check
      _
    $region19: #{tpu_custom_call.1} parent=1 // pred_check_branch
      %91 = sbr.rel (0) target = $region21
    $region20: #{tpu_custom_call.1} parent=1 // pred_region
      %93 = dma.done [#allocation4], 1024
    $region21: #{tpu_custom_call.1} parent=1 // pred_fallthru
      _
    %94 = vsyncpa [#allocation3], 1
    %95 = vsyncpa [#allocation4], 1

</llo_original>
